<compile_context>
chip_gen: v7x
topology: tpu7x:2x2x1
jax: 0.10.0
libtpu: 0.0.40
codegen_flags: <defaults>
</compile_context>

<pallas_src>
import jax
import jax.numpy as jnp
from jax.experimental import pallas as pl
from jax.experimental.pallas import tpu as pltpu


def _round_up(x, m):
    return ((x + m - 1) // m) * m


def _bary_interp_kernel(pos_ref, bary_ref, out_ref):
    # pos_ref : (1, 12, TM)  gathered vertex positions, row r = 3*k + j
    # bary_ref: (1, 4, TM)   barycentric weights (batch-invariant)
    # out_ref : (1, 3, TM)   interpolated positions
    g = pos_ref[0]                   # (12, TM)
    w = bary_ref[0]                  # (4, TM)
    # Unrolled over the 4 tetra vertices: pure VPU multiply-adds.
    out_ref[0] = (g[0:3] * w[0:1]
                  + g[3:6] * w[1:2]
                  + g[6:9] * w[2:3]
                  + g[9:12] * w[3:4])


def bary_interpolate(gathered12, bary_t, *, tm):
    """gathered12: (B,12,Mp) f32, bary_t: (1,4,Mp) f32 -> (B,3,Mp) f32."""
    B, R, Mp = gathered12.shape
    assert R == 12 and Mp % tm == 0 and tm % 128 == 0
    n_m = Mp // tm
    return pl.pallas_call(
        _bary_interp_kernel,
        out_shape=jax.ShapeDtypeStruct((B, 3, Mp), gathered12.dtype),
        # b innermost so the batch-invariant bary block index stays constant
        # across consecutive steps (pipeline skips the re-DMA).
        grid=(n_m, B),
        in_specs=[
            pl.BlockSpec((1, 12, tm), lambda m, b: (b, 0, m)),
            pl.BlockSpec((1, 4, tm), lambda m, b: (0, 0, m)),
        ],
        out_specs=pl.BlockSpec((1, 3, tm), lambda m, b: (b, 0, m)),
        compiler_params=pltpu.CompilerParams(
            dimension_semantics=("parallel", "parallel")),
    )(gathered12, bary_t)


class TetMeshJAX:
    """JAX/Pallas re-implementation of TetMesh.forward."""

    def __init__(self, points, tetras, bary, bary_ids, *, tm_target=4096):
        # points  : (1, V, 3) f32   rest-pose vertices (unused by forward itself)
        # tetras  : (T, 4)    i32   tetra vertex indices
        # bary    : (1, M, 4) f32   barycentric weights per sample point
        # bary_ids: (M,)      i32   tetra id per sample point
        self.points = points
        self.tetras = tetras
        self.A, self.B, self.C, self.D = (tetras[:, 0], tetras[:, 1],
                                          tetras[:, 2], tetras[:, 3])
        self.bary = bary
        self.bary_ids = bary_ids

        M = int(bary_ids.shape[0])
        self.M = M
        # Tile size: lane-aligned, as big as M allows (up to tm_target).
        m_pad = _round_up(M, 128)
        tm = min(tm_target, m_pad)
        m_pad = _round_up(m_pad, tm)
        self.tm = tm
        self.m_pad = m_pad

        # Fuse tetra-vertex lookup + bary_ids lookup into one per-sample table,
        # then precompute flat indices so a single XLA gather on points.reshape(B, 3V)
        # directly yields the lane-dense (B, 12, M) slab:
        #   idx12[3*k + j, m] = 3 * tetras[bary_ids[m], k] + j
        sample_verts = tetras[bary_ids]                       # (M, 4)
        svT = sample_verts.T.astype(jnp.int32)                # (4, M)
        idx12 = (svT[:, None, :] * 3
                 + jnp.arange(3, dtype=jnp.int32)[None, :, None]).reshape(12, M)
        # Pad the (constant) index table instead of runtime data -> zero extra copies.
        self.idx12 = jnp.pad(idx12, ((0, 0), (0, m_pad - M)))  # padded rows point at v0.x

        # Batch-invariant, lane-dense barycentric weights (1, 4, m_pad).
        bary_t = jnp.transpose(bary, (0, 2, 1)).astype(jnp.float32)
        self.bary_t = jnp.pad(bary_t, ((0, 0), (0, 0), (0, m_pad - M)))

        # TODO(synk): mesh I/O (meshio/trimesh), volume/gradient/fem_energy and
        # normal repair are init/aux paths, not part of forward(); omitted.

    def forward(self, points):
        # points: (B, V, 3) f32
        B, V, _ = points.shape
        points_flat = points.reshape(B, V * 3)
        # gathered12[b, 3k+j, m] = points[b, tetras[bary_ids[m], k], j]
        gathered12 = jnp.take(points_flat, self.idx12, axis=1)   # (B, 12, m_pad)
        out = bary_interpolate(gathered12, self.bary_t, tm=self.tm)  # (B, 3, m_pad)
        shape = jnp.transpose(out[:, :, :self.M], (0, 2, 1))         # (B, M, 3)
        return shape, points


def _reference_forward(points, tetras, bary, bary_ids):
    """Pure-JAX transcription of the PyTorch forward (for validation)."""
    A, Bv, Cv, Dv = tetras[:, 0], tetras[:, 1], tetras[:, 2], tetras[:, 3]
    positions = jnp.stack(
        [points[:, A], points[:, Bv], points[:, Cv], points[:, Dv]], axis=2)  # (B,T,4,3)
    positions = jnp.swapaxes(positions, 3, 2)                                 # (B,T,3,4)
    tets = positions[:, bary_ids]                                             # (B,M,3,4)
    b = jnp.broadcast_to(bary, (points.shape[0],) + bary.shape[1:])
    return jnp.einsum('bijk,bik->bij', tets, b)


if __name__ == "__main__":
    key = jax.random.PRNGKey(0)
    B, V, T, M = 2, 64, 32, 256  # batch, vertices, tetras, sample points

    k1, k2, k3, k4, k5 = jax.random.split(key, 5)
    rest_points = jax.random.normal(k1, (1, V, 3), dtype=jnp.float32)
    tetras = jax.random.randint(k2, (T, 4), 0, V, dtype=jnp.int32)
    bary_raw = jax.random.uniform(k3, (1, M, 4), dtype=jnp.float32) + 0.1
    bary = bary_raw / jnp.sum(bary_raw, axis=-1, keepdims=True)   # barycentric: sums to 1
    bary_ids = jax.random.randint(k4, (M,), 0, T, dtype=jnp.int32)
    points = jax.random.normal(k5, (B, V, 3), dtype=jnp.float32)

    mesh = TetMeshJAX(rest_points, tetras, bary, bary_ids)
    shape, pts_out = mesh.forward(points)
    shape = jax.block_until_ready(shape)
    pts_out = jax.block_until_ready(pts_out)

    ref = _reference_forward(points, tetras, bary, bary_ids)
    assert shape.shape == (B, M, 3) and shape.dtype == jnp.float32
    assert pts_out.shape == points.shape
    assert jnp.allclose(shape, ref, atol=1e-5, rtol=1e-5)
    assert jnp.array_equal(pts_out, points)
    print("KERNEL_OK")
</pallas_src>

<mosaic_0001>
module attributes {stable_mosaic.version = 11 : i64} {
  func.func @_bary_interp_kernel(%arg0: i32, %arg1: i32, %arg2: memref<1x12x256xf32, #tpu.memory_space<vmem>>, %arg3: memref<1x4x256xf32, #tpu.memory_space<vmem>>, %arg4: memref<1x3x256xf32, #tpu.memory_space<vmem>>) attributes {dimension_semantics = [#tpu.dimension_semantics<parallel>, #tpu.dimension_semantics<parallel>], iteration_bounds = array<i64: 1, 2>, scalar_prefetch = 0 : i64, scratch_operands = 0 : i64, tpu.core_type = #tpu.core_type<tc>, window_params = [{transform_indices = @transform_0, window_bounds = array<i64: 1, 12, 256>}, {transform_indices = @transform_1, window_bounds = array<i64: 1, 4, 256>}, {transform_indices = @transform_2, window_bounds = array<i64: 1, 3, 256>}]} {
    %c0 = arith.constant 0 : index
    %c0_0 = arith.constant 0 : index
    %c0_1 = arith.constant 0 : index
    %0 = vector.load %arg2[%c0, %c0_0, %c0_1] : memref<1x12x256xf32, #tpu.memory_space<vmem>>, vector<1x12x256xf32>
    %1 = vector.shape_cast %0 : vector<1x12x256xf32> to vector<12x256xf32>
    %c0_2 = arith.constant 0 : index
    %c0_3 = arith.constant 0 : index
    %c0_4 = arith.constant 0 : index
    %2 = vector.load %arg3[%c0_2, %c0_3, %c0_4] : memref<1x4x256xf32, #tpu.memory_space<vmem>>, vector<1x4x256xf32>
    %3 = vector.shape_cast %2 : vector<1x4x256xf32> to vector<4x256xf32>
    %4 = vector.extract_strided_slice %1 {offsets = [0, 0], sizes = [3, 256], strides = [1, 1]} : vector<12x256xf32> to vector<3x256xf32>
    %5 = vector.extract_strided_slice %3 {offsets = [0, 0], sizes = [1, 256], strides = [1, 1]} : vector<4x256xf32> to vector<1x256xf32>
    %6 = vector.broadcast %5 : vector<1x256xf32> to vector<3x256xf32>
    %7 = arith.mulf %4, %6 : vector<3x256xf32>
    %8 = vector.extract_strided_slice %1 {offsets = [3, 0], sizes = [3, 256], strides = [1, 1]} : vector<12x256xf32> to vector<3x256xf32>
    %9 = vector.extract_strided_slice %3 {offsets = [1, 0], sizes = [1, 256], strides = [1, 1]} : vector<4x256xf32> to vector<1x256xf32>
    %10 = vector.broadcast %9 : vector<1x256xf32> to vector<3x256xf32>
    %11 = arith.mulf %8, %10 : vector<3x256xf32>
    %12 = arith.addf %7, %11 : vector<3x256xf32>
    %13 = vector.extract_strided_slice %1 {offsets = [6, 0], sizes = [3, 256], strides = [1, 1]} : vector<12x256xf32> to vector<3x256xf32>
    %14 = vector.extract_strided_slice %3 {offsets = [2, 0], sizes = [1, 256], strides = [1, 1]} : vector<4x256xf32> to vector<1x256xf32>
    %15 = vector.broadcast %14 : vector<1x256xf32> to vector<3x256xf32>
    %16 = arith.mulf %13, %15 : vector<3x256xf32>
    %17 = arith.addf %12, %16 : vector<3x256xf32>
    %18 = vector.extract_strided_slice %1 {offsets = [9, 0], sizes = [3, 256], strides = [1, 1]} : vector<12x256xf32> to vector<3x256xf32>
    %19 = vector.extract_strided_slice %3 {offsets = [3, 0], sizes = [1, 256], strides = [1, 1]} : vector<4x256xf32> to vector<1x256xf32>
    %20 = vector.broadcast %19 : vector<1x256xf32> to vector<3x256xf32>
    %21 = arith.mulf %18, %20 : vector<3x256xf32>
    %22 = arith.addf %17, %21 : vector<3x256xf32>
    %c0_5 = arith.constant 0 : index
    %c0_6 = arith.constant 0 : index
    %c0_7 = arith.constant 0 : index
    %23 = vector.load %arg4[%c0_5, %c0_6, %c0_7] : memref<1x3x256xf32, #tpu.memory_space<vmem>>, vector<1x3x256xf32>
    %24 = vector.shape_cast %23 : vector<1x3x256xf32> to vector<3x256xf32>
    %25 = vector.shape_cast %22 : vector<3x256xf32> to vector<1x3x256xf32>
    tpu.vector_store %arg4[%c0_5, %c0_6, %c0_7], %25 {strides = array<i32>} : memref<1x3x256xf32, #tpu.memory_space<vmem>>, vector<1x3x256xf32>,
    return
  }
  func.func @transform_0(%arg0: i32, %arg1: i32) -> (i32, i32, i32) {
    %c0_i32 = arith.constant 0 : i32
    %c0_i32_0 = arith.constant 0 : i32
    return %arg1, %c0_i32, %arg0 : i32, i32, i32
  }
  func.func @transform_1(%arg0: i32, %arg1: i32) -> (i32, i32, i32) {
    %c0_i32 = arith.constant 0 : i32
    %c0_i32_0 = arith.constant 0 : i32
    %c0_i32_1 = arith.constant 0 : i32
    return %c0_i32, %c0_i32_0, %arg0 : i32, i32, i32
  }
  func.func @transform_2(%arg0: i32, %arg1: i32) -> (i32, i32, i32) {
    %c0_i32 = arith.constant 0 : i32
    %c0_i32_0 = arith.constant 0 : i32
    return %arg1, %c0_i32, %arg0 : i32, i32, i32
  }
}

</mosaic_0001>

<llo_original>
// kernel: tpu_custom_call.1
$region0: #{tpu_custom_call.1}
  #allocation0 [shape = 'u32[]', space=smem, size = 0x4, offset = 0x4, fixed_abs, tag = 'smem constant byte address 0x4 - core index']
  #allocation1 [shape = 'u32[144,128]{1,0:T(1,128)}', space=vmem, size = 0x12000, scoped, tag = 'internal scratch']
  %s0 = inlined_call_operand.vmem [shape: f32[2,12,256], index: 0, kind: input, shape index: {}]
  %s1 = inlined_call_operand.vmem [shape: f32[1,4,256], index: 1, kind: input, shape index: {}]
  %s2 = inlined_call_operand.vmem [shape: f32[2,3,256], index: 2, kind: output, shape index: {}]
  %s3 = sld [smem:[#allocation0]]
  $region41: #{tpu_custom_call.1} parent=0
    _
  %s5 = ssub.s32 1, %s3
  %s6 = scalar_select 0, %s5, %s3
  loop: start=0, step=1, limit=4
  $region2: #{tpu_custom_call.1} parent=0 // loop_pre_header
    _
  $region3: #{tpu_custom_call.1} parent=0 // loop_header
    %s8 = sphi 0, %s12
    %p9 = scmp.ge.s32.totalorder %s8, 4
    %s15 = sphi 0, %s27
    %s16 = sphi 0, %s23
    %s17 = sphi 0, %s15
    %s18 = sphi 0, %s16
    %s19 = sphi 0, %s17
    %s20 = sphi 0, %s18
    %s32 = sphi 0, %s34
    %s35 = sphi 0, %s32
    %s36 = sphi 0, %s35
    %s52 = sphi 0, %s36
    %s58 = sphi 0, %s60
    %s61 = sphi 0, %s58
    %s62 = sphi 0, %s61
    %s78 = sphi 0, %s62
    %s86 = sphi 0, %s88
    %s89 = sphi 0, %s86
    %s90 = sphi 0, %s89
    %s106 = sphi 0, %s90
  $region4: #{tpu_custom_call.1} parent=0 // loop_header_branch
    %11 = sbr.rel (%p9) target = $region8
  $region5: #{tpu_custom_call.1} parent=0 // loop_body
    %s13 = ssub.s32 %s8, 1
    %s14 = ssub.s32 %s8, 2
    %s21 = sadd.s32 1, %s16
    %p22 = scmp.ge.s32.totalorder %s21, 2
    %s23 = scalar_select %p22, 0, %s21
    %s24 = sadd.s32 1, %s15
    %s25 = scalar_select %p22, %s24, %s15
    %p26 = scmp.ge.s32.totalorder %s25, 1
    %s27 = scalar_select %p26, 0, %s25
    %s28 = ssub.s32 %s16, %s23
    %s29 = ssub.s32 %s15, %s27
    %s30 = sor.u32 %s28, %s29
    %p31 = scmp.eq.s32.totalorder %s30, 0
    %s33 = sadd.s32 %s32, 1
    %s34 = scalar_select %p31, %s32, %s33
    %p37 = pneg %p31
    %p38 = scmp.eq.s32.totalorder %s8, 1
    %p39 = por %p37, %p38
    %p40 = scmp.ne.s32.totalorder %s32, %s35
    %p41 = scmp.eq.s32.totalorder %s8, 0
    %p42 = por %p40, %p41
    %p43 = scmp.ne.s32.totalorder %s32, %s35
    %p44 = scmp.eq.s32.totalorder %s13, 1
    %p45 = por %p43, %p44
    %p46 = scmp.ne.s32.totalorder %s35, %s36
    %p47 = scmp.eq.s32.totalorder %s13, 0
    %p48 = por %p46, %p47
    %p49 = scmp.ne.s32.totalorder %s35, %s36
    %p50 = scmp.eq.s32.totalorder %s14, 1
    %p51 = por %p49, %p50
    %p53 = scmp.ne.s32.totalorder %s36, %s52
    %p54 = scmp.eq.s32.totalorder %s14, 0
    %p55 = por %p53, %p54
    %s56 = ssub.s32 %s15, %s27
    %p57 = scmp.eq.s32.totalorder %s56, 0
    %s59 = sadd.s32 %s58, 1
    %s60 = scalar_select %p57, %s58, %s59
    %p63 = pneg %p57
    %p64 = scmp.eq.s32.totalorder %s8, 1
    %p65 = por %p63, %p64
    %p66 = scmp.ne.s32.totalorder %s58, %s61
    %p67 = scmp.eq.s32.totalorder %s8, 0
    %p68 = por %p66, %p67
    %p69 = scmp.ne.s32.totalorder %s58, %s61
    %p70 = scmp.eq.s32.totalorder %s13, 1
    %p71 = por %p69, %p70
    %p72 = scmp.ne.s32.totalorder %s61, %s62
    %p73 = scmp.eq.s32.totalorder %s13, 0
    %p74 = por %p72, %p73
    %p75 = scmp.ne.s32.totalorder %s61, %s62
    %p76 = scmp.eq.s32.totalorder %s14, 1
    %p77 = por %p75, %p76
    %p79 = scmp.ne.s32.totalorder %s62, %s78
    %p80 = scmp.eq.s32.totalorder %s14, 0
    %p81 = por %p79, %p80
    %s82 = ssub.s32 %s16, %s23
    %s83 = ssub.s32 %s15, %s27
    %s84 = sor.u32 %s82, %s83
    %p85 = scmp.eq.s32.totalorder %s84, 0
    %s87 = sadd.s32 %s86, 1
    %s88 = scalar_select %p85, %s86, %s87
    %p91 = pneg %p85
    %p92 = scmp.eq.s32.totalorder %s8, 1
    %p93 = por %p91, %p92
    %p94 = scmp.ne.s32.totalorder %s86, %s89
    %p95 = scmp.eq.s32.totalorder %s8, 0
    %p96 = por %p94, %p95
    %p97 = scmp.ne.s32.totalorder %s86, %s89
    %p98 = scmp.eq.s32.totalorder %s13, 1
    %p99 = por %p97, %p98
    %p100 = scmp.ne.s32.totalorder %s89, %s90
    %p101 = scmp.eq.s32.totalorder %s13, 0
    %p102 = por %p100, %p101
    %p103 = scmp.ne.s32.totalorder %s89, %s90
    %p104 = scmp.eq.s32.totalorder %s14, 1
    %p105 = por %p103, %p104
    %p107 = scmp.ne.s32.totalorder %s90, %s106
    %p108 = scmp.eq.s32.totalorder %s14, 0
    %p109 = por %p107, %p108
    %p110 = scmp.le.s32.totalorder 1, %s8
    %p111 = scmp.lt.s32.totalorder %s8, 3
    %p112 = pnand %p110, %p111
    %p113 = pneg %p112
    // Predicated region
    $region9: #{tpu_custom_call.1} parent=5 // pred_check
      _
    $region10: #{tpu_custom_call.1} parent=5 // pred_check_branch
      %115 = sbr.rel (%p112) target = $region12
    $region11: #{tpu_custom_call.1} parent=5 // pred_region
      %s116 = ssub.s32 %s8, 1
      // Predicated region
      $region13: #{tpu_custom_call.1} parent=11 // pred_check
        %p117 = pneg %p74
      $region14: #{tpu_custom_call.1} parent=11 // pred_check_branch
        %119 = sbr.rel (%p117) target = $region16
      $region15: #{tpu_custom_call.1} parent=11 // pred_region
        %s120 = smul.u32 2, %s17
        %p121 = scmp.lt.s32.totalorder %s120, 1
        %s122 = scalar_select %p121, %s120, 1
        %s123 = smul.addr %s122, 4
        %s124 = scalar_lea.vmem %s1, %s123
        %s125 = smul.u32 2, %s17
      $region16: #{tpu_custom_call.1} parent=11 // pred_fallthru
        _
    $region12: #{tpu_custom_call.1} parent=5 // pred_fallthru
      _
    %p126 = scmp.lt.s32.totalorder %s8, 2
    // Predicated region
    $region17: #{tpu_custom_call.1} parent=5 // pred_check
      %p127 = pneg %p126
    $region18: #{tpu_custom_call.1} parent=5 // pred_check_branch
      %129 = sbr.rel (%p127) target = $region20
    $region19: #{tpu_custom_call.1} parent=5 // pred_region
      // Predicated region
      $region21: #{tpu_custom_call.1} parent=19 // pred_check
        %p130 = pneg %p42
      $region22: #{tpu_custom_call.1} parent=19 // pred_check_branch
        %132 = sbr.rel (%p130) target = $region24
      $region23: #{tpu_custom_call.1} parent=19 // pred_region
        %s133 = smul.u32 2, %s15
        %p134 = scmp.lt.s32.totalorder %s16, 1
        %s135 = scalar_select %p134, %s16, 1
        %p136 = scmp.lt.s32.totalorder %s133, 1
        %s137 = scalar_select %p136, %s133, 1
        %s138 = smul.addr %s135, 4
        %s139 = sadd.s32 %s137, %s138
        %s140 = smul.addr %s139, 8
        %s141 = scalar_lea.vmem %s0, %s140
        %s142 = smul.u32 2, %s15
      $region24: #{tpu_custom_call.1} parent=19 // pred_fallthru
        _
    $region20: #{tpu_custom_call.1} parent=5 // pred_fallthru
      _
    %p143 = scmp.le.s32.totalorder 1, %s8
    %p144 = scmp.lt.s32.totalorder %s8, 3
    %p145 = pnand %p143, %p144
    %p146 = pneg %p145
    // Predicated region
    $region25: #{tpu_custom_call.1} parent=5 // pred_check
      _
    $region26: #{tpu_custom_call.1} parent=5 // pred_check_branch
      %148 = sbr.rel (%p145) target = $region28
    $region27: #{tpu_custom_call.1} parent=5 // pred_region
      %s149 = ssub.s32 %s8, 1
      %s150 = smul.u32 2, %s17
      %p151 = scmp.lt.s32.totalorder %s18, 1
      %s152 = scalar_select %p151, %s18, 1
      %p153 = scmp.lt.s32.totalorder %s150, 1
      %s154 = scalar_select %p153, %s150, 1
      %s155 = smul.addr %s152, 4
      %s156 = sadd.s32 %s154, %s155
      %s157 = smul.addr %s156, 8
      %s158 = scalar_lea.vmem %s0, %s157
      %p159 = pneg %p48
      %p160 = pneg %p45
      %s161 = smul.u32 2, %s17
      %p162 = scmp.lt.s32.totalorder %s161, 1
      %s163 = scalar_select %p162, %s161, 1
      %s164 = smul.addr %s163, 4
      %s165 = scalar_lea.vmem %s1, %s164
      %p166 = pneg %p74
      %p167 = pneg %p71
      %p168 = pneg %p102
      %p169 = pneg %p99
      %s170 = smul.u32 2, %s17
      %p171 = scmp.lt.s32.totalorder %s18, 1
      %s172 = scalar_select %p171, %s18, 1
      %p173 = scmp.lt.s32.totalorder %s170, 1
      %s174 = scalar_select %p173, %s170, 1
      %s175 = smul.addr %s172, 2
      %s176 = sadd.s32 %s174, %s175
      %s177 = smul.addr %s176, 4
      %s178 = scalar_lea.vmem %s2, %s177
      %s179 = smul.u32 2, %s17
      %p180 = scmp.lt.s32.totalorder %s18, 1
      %s181 = scalar_select %p180, %s18, 1
      %p182 = scmp.lt.s32.totalorder %s179, 1
      %s183 = scalar_select %p182, %s179, 1
      %s184 = smul.addr %s181, 4
      %s185 = sadd.s32 %s183, %s184
      %s186 = smul.addr %s185, 8
      %s187 = scalar_lea.vmem %s0, %s186
      %s188 = smul.u32 2, %s17
      %s189 = smul.u32 2, %s17
      %p190 = scmp.lt.s32.totalorder %s189, 1
      %s191 = scalar_select %p190, %s189, 1
      %s192 = smul.addr %s191, 4
      %s193 = scalar_lea.vmem %s1, %s192
      %s194 = smul.u32 2, %s17
      %s195 = smul.u32 2, %s17
      %p196 = scmp.lt.s32.totalorder %s18, 1
      %s197 = scalar_select %p196, %s18, 1
      %p198 = scmp.lt.s32.totalorder %s195, 1
      %s199 = scalar_select %p198, %s195, 1
      %s200 = smul.addr %s197, 2
      %s201 = sadd.s32 %s199, %s200
      %s202 = smul.addr %s201, 4
      %s203 = scalar_lea.vmem %s2, %s202
      %s204 = smul.u32 2, %s17
      %v205 = vld [vmem:[%s187] sm:$0xff]
      %v206 = vld [vmem:[%s187 + $0x8] sm:$0xff]
      %v207 = vld [vmem:[%s187 + $0x10] sm:$0xf]
      %v208 = vld [vmem:[%s187 + $0x18] sm:$0xf]
      %v209 = vld [vmem:[%s193] sm:$0xff]
      %v211 = vlaneseq
      %v212 = vshrl.u32 %v211, 7
      %v213 = vsub.s32 0, %v212
      %v214 = vrot.slane %v209, %v213
      %v215 = vlaneseq
      %v216 = vshrl.u32 %v215, 7
      %v217 = vsub.s32 4, %v216
      %v218 = vrot.slane %v209, %v217
      %v221 = vlaneseq
      %v222 = vshrl.u32 %v221, 7
      %v223 = vsub.s32 0, %v222
      %v224 = vrot.slane %v214, %v223
      %v225 = vlaneseq
      %v226 = vshrl.u32 %v225, 7
      %v227 = vsub.s32 0, %v226
      %v228 = vrot.slane %v218, %v227
      %v229 = vmul.f32 %v205, %v224
      %v230 = vmul.f32 %v206, %v228
      %v231 = vlaneseq
      %v232 = vshrl.u32 %v231, 7
      %v233 = vsub.s32 1, %v232
      %v234 = vrot.slane %v209, %v233
      %v235 = vlaneseq
      %v236 = vshrl.u32 %v235, 7
      %v237 = vsub.s32 5, %v236
      %v238 = vrot.slane %v209, %v237
      %v241 = vlaneseq
      %v242 = vshrl.u32 %v241, 7
      %v243 = vsub.s32 1, %v242
      %v244 = vrot.slane %v234, %v243
      %v245 = vlaneseq
      %v246 = vshrl.u32 %v245, 7
      %v247 = vsub.s32 1, %v246
      %v248 = vrot.slane %v238, %v247
      %v249 = vmul.f32 %v205, %v244
      %v250 = vmul.f32 %v206, %v248
      %v253 = vrot.slane %v249, 3
      %v254 = vrot.slane %v250, 3
      %v257 = vadd.f32 %v229, %v253
      %v258 = vadd.f32 %v230, %v254
      %v259 = vlaneseq
      %v260 = vshrl.u32 %v259, 7
      %v261 = vsub.s32 2, %v260
      %v262 = vrot.slane %v209, %v261
      %v263 = vlaneseq
      %v264 = vshrl.u32 %v263, 7
      %v265 = vsub.s32 6, %v264
      %v266 = vrot.slane %v209, %v265
      %v269 = vlaneseq
      %v270 = vshrl.u32 %v269, 7
      %v271 = vsub.s32 2, %v270
      %v272 = vrot.slane %v262, %v271
      %v273 = vlaneseq
      %v274 = vshrl.u32 %v273, 7
      %v275 = vsub.s32 2, %v274
      %v276 = vrot.slane %v266, %v275
      %v277 = vmul.f32 %v205, %v272
      %v278 = vmul.f32 %v206, %v276
      %v279 = vmul.f32 %v207, %v272
      %v280 = vmul.f32 %v208, %v276
      %vm285 = vcmask 1041408
      %v286 = vrot.slane %v277, 6
      %v287 = vrot.slane %v279, 6
      %v288 = vsel %vm285, %v286, %v287
      %v289 = vrot.slane %v278, 6
      %v290 = vrot.slane %v280, 6
      %v291 = vsel %vm285, %v289, %v290
      %v294 = vadd.f32 %v257, %v288
      %v295 = vadd.f32 %v258, %v291
      %v296 = vlaneseq
      %v297 = vshrl.u32 %v296, 7
      %v298 = vsub.s32 3, %v297
      %v299 = vrot.slane %v209, %v298
      %v300 = vlaneseq
      %v301 = vshrl.u32 %v300, 7
      %v302 = vsub.s32 7, %v301
      %v303 = vrot.slane %v209, %v302
      %v306 = vlaneseq
      %v307 = vshrl.u32 %v306, 7
      %v308 = vsub.s32 3, %v307
      %v309 = vrot.slane %v299, %v308
      %v310 = vlaneseq
      %v311 = vshrl.u32 %v310, 7
      %v312 = vsub.s32 3, %v311
      %v313 = vrot.slane %v303, %v312
      %v314 = vmul.f32 %v207, %v309
      %v315 = vmul.f32 %v208, %v313
      %v318 = vrot.slane %v314, 1
      %v319 = vrot.slane %v315, 1
      %v322 = vadd.f32 %v294, %v318
      %v323 = vadd.f32 %v295, %v319
      %v326 = vcombine.low %v322, %v323
      %328 = vst [vmem:[%s203] sm:$0x77] %v326
      %s329 = smul.u32 2, %s17
      %p330 = scmp.lt.s32.totalorder %s18, 1
      %s331 = scalar_select %p330, %s18, 1
      %p332 = scmp.lt.s32.totalorder %s329, 1
      %s333 = scalar_select %p332, %s329, 1
      %s334 = smul.addr %s331, 2
      %s335 = sadd.s32 %s333, %s334
      %s336 = smul.addr %s335, 4
      %s337 = scalar_lea.vmem %s2, %s336
      // Predicated region
      $region29: #{tpu_custom_call.1} parent=27 // pred_check
        %p338 = pneg %p99
      $region30: #{tpu_custom_call.1} parent=27 // pred_check_branch
        %340 = sbr.rel (%p338) target = $region32
      $region31: #{tpu_custom_call.1} parent=27 // pred_region
        %s341 = smul.u32 2, %s17
      $region32: #{tpu_custom_call.1} parent=27 // pred_fallthru
        _
    $region28: #{tpu_custom_call.1} parent=5 // pred_fallthru
      _
    %p342 = scmp.le.s32.totalorder 2, %s8
    // Predicated region
    $region33: #{tpu_custom_call.1} parent=5 // pred_check
      %p343 = pneg %p342
    $region34: #{tpu_custom_call.1} parent=5 // pred_check_branch
      %345 = sbr.rel (%p343) target = $region36
    $region35: #{tpu_custom_call.1} parent=5 // pred_region
      %s346 = ssub.s32 %s8, 2
      // Predicated region
      $region37: #{tpu_custom_call.1} parent=35 // pred_check
        %p347 = pneg %p105
      $region38: #{tpu_custom_call.1} parent=35 // pred_check_branch
        %349 = sbr.rel (%p347) target = $region40
      $region39: #{tpu_custom_call.1} parent=35 // pred_region
        %s350 = smul.u32 2, %s19
        %p351 = scmp.lt.s32.totalorder %s20, 1
        %s352 = scalar_select %p351, %s20, 1
        %p353 = scmp.lt.s32.totalorder %s350, 1
        %s354 = scalar_select %p353, %s350, 1
        %s355 = smul.addr %s352, 2
        %s356 = sadd.s32 %s354, %s355
        %s357 = smul.addr %s356, 4
        %s358 = scalar_lea.vmem %s2, %s357
      $region40: #{tpu_custom_call.1} parent=35 // pred_fallthru
        _
    $region36: #{tpu_custom_call.1} parent=5 // pred_fallthru
      _
  $region6: #{tpu_custom_call.1} parent=0 // loop_footer
    %s12 = sadd.s32 1, %s8
  $region7: #{tpu_custom_call.1} parent=0 // loop_footer_branch
    %7 = sbr.rel target = $region3
  $region8: #{tpu_custom_call.1} parent=0 // loop_exit
    _

</llo_original>
